<compile_context>
chip_gen: v5e
topology: v5e:2x2
jax: 0.10.0
libtpu: 0.0.40
codegen_flags: <defaults>
</compile_context>

<pallas_src>
import jax
import jax.numpy as jnp
from jax.experimental import pallas as pl
from jax.experimental.pallas import tpu as pltpu

_MiB = 1024 * 1024


def _round_up(x: int, m: int) -> int:
    return ((x + m - 1) // m) * m


def _vmem_limit_bytes() -> int:
    cap = 64 * _MiB  # conservative fallback (v7x per-TensorCore VMEM)
    try:
        info = pltpu.get_tpu_info()
        cap = int(getattr(info, "vmem_capacity_bytes", cap))
    except Exception:
        pass
    # -> 64 MiB on v5e/v6e (128 MiB physical), ~48 MiB on v7x (64 MiB physical).
    return min((cap * 3) // 4, 64 * _MiB)


def _make_tv_kernel(*, W, HW, block_bc, blocks_per_core, BC,
                    compute_h, compute_w, needs_row_mask):
    def kernel(wmask_ref, x_ref, h_ref, w_ref):
        i = pl.program_id(1)

        @pl.when(i == 0)
        def _init():
            h_ref[...] = jnp.zeros_like(h_ref)
            w_ref[...] = jnp.zeros_like(w_ref)

        x = x_ref[...].astype(jnp.float32)                      # (block_bc, HW)

        if needs_row_mask:
            # Ragged tail / duplicated padding step: zero rows whose global
            # index is >= BC.  Select (not multiply) so garbage inf/NaN in the
            # out-of-bounds part of the VMEM buffer cannot leak.
            step = pl.program_id(0) * blocks_per_core + i
            row = jax.lax.broadcasted_iota(jnp.int32, (block_bc, 1), 0)
            x = jnp.where(step * block_bc + row < BC, x, 0.0)

        if compute_h:
            dh = x[:, W:] - x[:, : HW - W]                       # all positions valid
            hcol = jnp.sum(dh * dh, axis=0, keepdims=True)       # (1, HW - W)
            hpart = jnp.sum(hcol, axis=1, keepdims=True)         # (1, 1)
            h_ref[...] += hpart[:, :, None]                      # broadcast into (1,8,128)
        if compute_w:
            dw = x[:, 1:] - x[:, : HW - 1]                       # row-boundary terms masked below
            wcol = jnp.sum(dw * dw, axis=0, keepdims=True)       # (1, HW - 1)
            wcol = wcol * wmask_ref[...]                         # tiny, post block-axis reduction
            wpart = jnp.sum(wcol, axis=1, keepdims=True)         # (1, 1)
            w_ref[...] += wpart[:, :, None]

    return kernel


def tv_loss(x, tv_loss_weight: float = 1.0, *, block_rows=None):
    """Pallas TPU implementation of TVLoss.forward for NCHW input `x`."""
    B, C, H, W = x.shape
    HW = H * W
    compute_h = H >= 2
    compute_w = W >= 2
    if not compute_h and not compute_w:
        return jnp.asarray(0.0, jnp.float32)

    BC = B * C
    x2 = x.reshape(BC, HW)  # free leading-dim merge; lane-dense last dim

    vmem_limit = _vmem_limit_bytes()
    itemsize = jnp.dtype(x.dtype).itemsize
    hw_pad = _round_up(HW, 128)
    mask_cols = max(HW - 1, 1)
    mask_vmem = 2 * 8 * _round_up(mask_cols, 128) * 4         # resident boundary mask
    acc_vmem = 2 * 2 * 8 * 128 * 4                            # two tiny accumulators

    if block_rows is None:
        budget = max(int(vmem_limit * 0.7) - mask_vmem - acc_vmem, 1)
        # double-buffered input block + f32 upcast / dh / dw / square temporaries
        per_row = hw_pad * (2 * itemsize + 8 * 4)
        block_rows = budget // per_row
    if block_rows >= BC:
        block_bc = BC
    else:
        block_bc = max(8, (int(block_rows) // 8) * 8)
        block_bc = min(block_bc, BC)
    # TODO(synk): a single 8-row slab (8 x H*W) bigger than VMEM would need a
    # spatially-blocked variant with halo rows; not implemented here.

    nblocks = -(-BC // block_bc)
    num_cores = 2 if nblocks >= 2 else 1          # v7x: split the BC stream over both TCs
    bpc = -(-nblocks // num_cores)
    padded_bc = num_cores * bpc * block_bc
    needs_row_mask = padded_bc != BC

    # Tiny constant mask killing the per-row wraparound terms of the flat W-diff.
    if compute_w:
        k = jnp.arange(HW - 1, dtype=jnp.int32)
        w_mask = ((k % W) != (W - 1)).astype(jnp.float32).reshape(1, HW - 1)
    else:
        w_mask = jnp.zeros((1, 1), jnp.float32)

    mask_spec = pl.BlockSpec(w_mask.shape, lambda p, i: (0, 0))
    x_spec = pl.BlockSpec(
        (block_bc, HW),
        # Clamp so padding steps re-read the last real block (their contribution
        # is zeroed by the in-kernel row mask).
        lambda p, i: (jnp.minimum(p * bpc + i, nblocks - 1), 0))
    out_spec = pl.BlockSpec((1, 8, 128), lambda p, i: (p, 0, 0))
    out_shape = jax.ShapeDtypeStruct((num_cores, 8, 128), jnp.float32)

    kernel = _make_tv_kernel(
        W=W, HW=HW, block_bc=block_bc, blocks_per_core=bpc, BC=BC,
        compute_h=compute_h, compute_w=compute_w, needs_row_mask=needs_row_mask)

    n_elems = BC * HW
    h_out, w_out = pl.pallas_call(
        kernel,
        out_shape=(out_shape, out_shape),
        grid_spec=pltpu.PrefetchScalarGridSpec(
            num_scalar_prefetch=0,
            grid=(num_cores, bpc),
            in_specs=[mask_spec, x_spec],
            out_specs=[out_spec, out_spec],
        ),
        compiler_params=pltpu.CompilerParams(
            dimension_semantics=("parallel", "arbitrary"),
            vmem_limit_bytes=vmem_limit,
        ),
        cost_estimate=pl.CostEstimate(
            flops=6 * n_elems,
            transcendentals=0,
            bytes_accessed=n_elems * itemsize + w_mask.size * 4
                           + 2 * num_cores * 8 * 128 * 4,
        ),
    )(w_mask, x2)

    # Final scalar math on a handful of values.
    count_h = C * (H - 1) * W
    count_w = C * H * (W - 1)
    total = jnp.asarray(0.0, jnp.float32)
    if count_h != 0:
        total = total + jnp.sum(h_out[:, 0, 0]) / count_h
    if count_w != 0:
        total = total + jnp.sum(w_out[:, 0, 0]) / count_w
    return (tv_loss_weight * 2.0 / B) * total


def tv_loss_ref(x, tv_loss_weight: float = 1.0):
    """Plain-JAX reference matching the PyTorch module."""
    B, C, H, W = x.shape
    count_h = C * (H - 1) * W
    count_w = C * H * (W - 1)
    total = jnp.asarray(0.0, jnp.float32)
    if count_h != 0:
        total = total + jnp.sum((x[:, :, 1:, :] - x[:, :, :-1, :]) ** 2) / count_h
    if count_w != 0:
        total = total + jnp.sum((x[:, :, :, 1:] - x[:, :, :, :-1]) ** 2) / count_w
    return (tv_loss_weight * 2.0 / B) * total


if __name__ == "__main__":
    key = jax.random.PRNGKey(0)
    k1, k2, k3, k4 = jax.random.split(key, 4)

    # Case 1: typical small NCHW input, single block, mask-free fast path.
    x1 = jax.random.normal(k1, (2, 4, 16, 16), dtype=jnp.float32)
    y1 = jax.block_until_ready(tv_loss(x1))
    r1 = tv_loss_ref(x1)
    assert y1.shape == ()
    assert jnp.allclose(y1, r1, rtol=1e-4, atol=1e-6), (y1, r1)

    # Case 2: ragged B*C (15 rows, blocks of 8) -> 2-way grid split + tail mask.
    x2 = jax.random.normal(k2, (3, 5, 16, 16), dtype=jnp.float32)
    y2 = jax.block_until_ready(tv_loss(x2, block_rows=8))
    r2 = tv_loss_ref(x2)
    assert jnp.allclose(y2, r2, rtol=1e-4, atol=1e-6), (y2, r2)

    # Case 3: B*C=24 with blocks of 8 -> odd block count, duplicated padding
    # step that must be fully masked out; non-default weight.
    x3 = jax.random.normal(k3, (2, 12, 16, 16), dtype=jnp.float32)
    y3 = jax.block_until_ready(tv_loss(x3, 0.5, block_rows=8))
    r3 = tv_loss_ref(x3, 0.5)
    assert jnp.allclose(y3, r3, rtol=1e-4, atol=1e-6), (y3, r3)

    # Case 4: non-square spatial, W not a power of two.
    x4 = jax.random.normal(k4, (2, 3, 8, 24), dtype=jnp.float32)
    y4 = jax.block_until_ready(tv_loss(x4))
    r4 = tv_loss_ref(x4)
    assert jnp.allclose(y4, r4, rtol=1e-4, atol=1e-6), (y4, r4)

    # Case 5: H == 1 (count_h == 0 branch).
    x5 = jax.random.normal(key, (2, 3, 1, 16), dtype=jnp.float32)
    y5 = jax.block_until_ready(tv_loss(x5))
    r5 = tv_loss_ref(x5)
    assert jnp.allclose(y5, r5, rtol=1e-4, atol=1e-6), (y5, r5)

    print("KERNEL_OK")
</pallas_src>

<mosaic_0001>
module attributes {stable_mosaic.version = 11 : i64} {
  func.func @kernel(%arg0: i32, %arg1: i32, %arg2: memref<1x255xf32, #tpu.memory_space<vmem>>, %arg3: memref<8x256xf32, #tpu.memory_space<vmem>>, %arg4: memref<1x8x128xf32, #tpu.memory_space<vmem>>, %arg5: memref<1x8x128xf32, #tpu.memory_space<vmem>>) attributes {dimension_semantics = [#tpu.dimension_semantics<parallel>, #tpu.dimension_semantics<arbitrary>], iteration_bounds = array<i64: 1, 1>, scalar_prefetch = 0 : i64, scratch_operands = 0 : i64, tpu.core_type = #tpu.core_type<tc>, window_params = [{pipeline_mode = #tpu.pipeline_mode<synchronous>, transform_indices = @transform_0, window_bounds = array<i64: 1, 255>}, {transform_indices = @transform_1, window_bounds = array<i64: 8, 256>}, {transform_indices = @transform_2, window_bounds = array<i64: 1, 8, 128>}, {transform_indices = @transform_3, window_bounds = array<i64: 1, 8, 128>}]} {
    %c0_i32 = arith.constant 0 : i32
    %0 = arith.cmpi eq, %arg1, %c0_i32 : i32
    %1 = arith.extui %0 : i1 to i32
    %c0_i32_0 = arith.constant 0 : i32
    %2 = arith.cmpi ne, %1, %c0_i32_0 : i32
    scf.if %2 {
      %cst_19 = arith.constant 0.000000e+00 : f32
      %32 = vector.broadcast %cst_19 : f32 to vector<1x8x128xf32>
      %c0_20 = arith.constant 0 : index
      %c0_21 = arith.constant 0 : index
      %c0_22 = arith.constant 0 : index
      %33 = vector.load %arg4[%c0_20, %c0_21, %c0_22] : memref<1x8x128xf32, #tpu.memory_space<vmem>>, vector<1x8x128xf32>
      tpu.vector_store %arg4[%c0_20, %c0_21, %c0_22], %32 {strides = array<i32>} : memref<1x8x128xf32, #tpu.memory_space<vmem>>, vector<1x8x128xf32>,
      %cst_23 = arith.constant 0.000000e+00 : f32
      %34 = vector.broadcast %cst_23 : f32 to vector<1x8x128xf32>
      %c0_24 = arith.constant 0 : index
      %c0_25 = arith.constant 0 : index
      %c0_26 = arith.constant 0 : index
      %35 = vector.load %arg5[%c0_24, %c0_25, %c0_26] : memref<1x8x128xf32, #tpu.memory_space<vmem>>, vector<1x8x128xf32>
      tpu.vector_store %arg5[%c0_24, %c0_25, %c0_26], %34 {strides = array<i32>} : memref<1x8x128xf32, #tpu.memory_space<vmem>>, vector<1x8x128xf32>,
    } else {
    }
    %c0 = arith.constant 0 : index
    %c0_1 = arith.constant 0 : index
    %3 = vector.load %arg3[%c0, %c0_1] : memref<8x256xf32, #tpu.memory_space<vmem>>, vector<8x256xf32>
    %4 = vector.extract_strided_slice %3 {offsets = [0, 16], sizes = [8, 240], strides = [1, 1]} : vector<8x256xf32> to vector<8x240xf32>
    %5 = vector.extract_strided_slice %3 {offsets = [0, 0], sizes = [8, 240], strides = [1, 1]} : vector<8x256xf32> to vector<8x240xf32>
    %6 = arith.subf %4, %5 : vector<8x240xf32>
    %7 = arith.mulf %6, %6 : vector<8x240xf32>
    %cst = arith.constant dense<0.000000e+00> : vector<240xf32>
    %8 = vector.multi_reduction <add>, %7, %cst [0] : vector<8x240xf32> to vector<240xf32>
    %9 = vector.shape_cast %8 : vector<240xf32> to vector<1x240xf32>
    %cst_2 = arith.constant dense<0.000000e+00> : vector<1xf32>
    %10 = vector.multi_reduction <add>, %9, %cst_2 [1] : vector<1x240xf32> to vector<1xf32>
    %11 = vector.shape_cast %10 : vector<1xf32> to vector<1x1xf32>
    %c0_3 = arith.constant 0 : index
    %c0_4 = arith.constant 0 : index
    %c0_5 = arith.constant 0 : index
    %12 = vector.load %arg4[%c0_3, %c0_4, %c0_5] : memref<1x8x128xf32, #tpu.memory_space<vmem>>, vector<1x8x128xf32>
    %13 = vector.shape_cast %11 : vector<1x1xf32> to vector<1x1x1xf32>
    %14 = vector.broadcast %13 : vector<1x1x1xf32> to vector<1x8x128xf32>
    %15 = arith.addf %12, %14 : vector<1x8x128xf32>
    %c0_6 = arith.constant 0 : index
    %c0_7 = arith.constant 0 : index
    %c0_8 = arith.constant 0 : index
    %16 = vector.load %arg4[%c0_6, %c0_7, %c0_8] : memref<1x8x128xf32, #tpu.memory_space<vmem>>, vector<1x8x128xf32>
    tpu.vector_store %arg4[%c0_6, %c0_7, %c0_8], %15 {strides = array<i32>} : memref<1x8x128xf32, #tpu.memory_space<vmem>>, vector<1x8x128xf32>,
    %17 = vector.extract_strided_slice %3 {offsets = [0, 1], sizes = [8, 255], strides = [1, 1]} : vector<8x256xf32> to vector<8x255xf32>
    %18 = vector.extract_strided_slice %3 {offsets = [0, 0], sizes = [8, 255], strides = [1, 1]} : vector<8x256xf32> to vector<8x255xf32>
    %19 = arith.subf %17, %18 : vector<8x255xf32>
    %20 = arith.mulf %19, %19 : vector<8x255xf32>
    %cst_9 = arith.constant dense<0.000000e+00> : vector<255xf32>
    %21 = vector.multi_reduction <add>, %20, %cst_9 [0] : vector<8x255xf32> to vector<255xf32>
    %22 = vector.shape_cast %21 : vector<255xf32> to vector<1x255xf32>
    %c0_10 = arith.constant 0 : index
    %c0_11 = arith.constant 0 : index
    %23 = vector.load %arg2[%c0_10, %c0_11] : memref<1x255xf32, #tpu.memory_space<vmem>>, vector<1x255xf32>
    %24 = arith.mulf %22, %23 : vector<1x255xf32>
    %cst_12 = arith.constant dense<0.000000e+00> : vector<1xf32>
    %25 = vector.multi_reduction <add>, %24, %cst_12 [1] : vector<1x255xf32> to vector<1xf32>
    %26 = vector.shape_cast %25 : vector<1xf32> to vector<1x1xf32>
    %c0_13 = arith.constant 0 : index
    %c0_14 = arith.constant 0 : index
    %c0_15 = arith.constant 0 : index
    %27 = vector.load %arg5[%c0_13, %c0_14, %c0_15] : memref<1x8x128xf32, #tpu.memory_space<vmem>>, vector<1x8x128xf32>
    %28 = vector.shape_cast %26 : vector<1x1xf32> to vector<1x1x1xf32>
    %29 = vector.broadcast %28 : vector<1x1x1xf32> to vector<1x8x128xf32>
    %30 = arith.addf %27, %29 : vector<1x8x128xf32>
    %c0_16 = arith.constant 0 : index
    %c0_17 = arith.constant 0 : index
    %c0_18 = arith.constant 0 : index
    %31 = vector.load %arg5[%c0_16, %c0_17, %c0_18] : memref<1x8x128xf32, #tpu.memory_space<vmem>>, vector<1x8x128xf32>
    tpu.vector_store %arg5[%c0_16, %c0_17, %c0_18], %30 {strides = array<i32>} : memref<1x8x128xf32, #tpu.memory_space<vmem>>, vector<1x8x128xf32>,
    return
  }
  func.func @transform_0(%arg0: i32, %arg1: i32) -> (i32, i32) {
    %c0_i32 = arith.constant 0 : i32
    %c0_i32_0 = arith.constant 0 : i32
    %c0_i32_1 = arith.constant 0 : i32
    return %c0_i32, %c0_i32_0 : i32, i32
  }
  func.func @transform_1(%arg0: i32, %arg1: i32) -> (i32, i32) {
    %c1_i32 = arith.constant 1 : i32
    %0 = arith.muli %arg0, %c1_i32 : i32
    %1 = arith.addi %0, %arg1 : i32
    %c0_i32 = arith.constant 0 : i32
    %2 = arith.minsi %1, %c0_i32 : i32
    %c0_i32_0 = arith.constant 0 : i32
    %c0_i32_1 = arith.constant 0 : i32
    return %2, %c0_i32_0 : i32, i32
  }
  func.func @transform_2(%arg0: i32, %arg1: i32) -> (i32, i32, i32) {
    %c0_i32 = arith.constant 0 : i32
    %c0_i32_0 = arith.constant 0 : i32
    %c0_i32_1 = arith.constant 0 : i32
    return %arg0, %c0_i32, %c0_i32_0 : i32, i32, i32
  }
  func.func @transform_3(%arg0: i32, %arg1: i32) -> (i32, i32, i32) {
    %c0_i32 = arith.constant 0 : i32
    %c0_i32_0 = arith.constant 0 : i32
    %c0_i32_1 = arith.constant 0 : i32
    return %arg0, %c0_i32, %c0_i32_0 : i32, i32, i32
  }
}

</mosaic_0001>

<llo_original>
// kernel: tpu_custom_call.1
$region0: #{tpu_custom_call.1}
  #allocation0 [shape = 'u32[]', space=smem, size = 0x4, offset = 0x4, fixed_abs, tag = 'smem constant byte address 0x4 - core index']
  #allocation1 [shape = 'u32[72,128]{1,0:T(1,128)}', space=vmem, size = 0x9000, scoped, tag = 'internal scratch']
  %s0 = inlined_call_operand.hbm [shape: f32[1,255], index: 0, kind: input, shape index: {}]
  %s1 = inlined_call_operand.hbm [shape: f32[8,256], index: 1, kind: input, shape index: {}]
  %s2 = inlined_call_operand.hbm [shape: f32[1,8,128], index: 2, kind: output, shape index: {0}]
  %s3 = inlined_call_operand.hbm [shape: f32[1,8,128], index: 3, kind: output, shape index: {1}]
  %4 = xla_tuple %s2, %s3
  %s5 = sld [smem:[#allocation0]]
  $region38: #{tpu_custom_call.1} parent=0
    _
  %s7 = ssub.s32 1, %s5
  %s8 = scalar_select 0, %s7, %s5
  $region1: #{tpu_custom_call.1} parent=0
    #allocation2 [shape = 'u8[1024]{0}', space=vmem, size = 0x400, scoped, tag = 'input window, operand 0, single buffered']
    #allocation3 [shape = 's32[1]{0}', space=sflag, size = 0x4, scoped, tag = 'scoped memory for tpu_custom_call.1']
    #allocation4 [shape = 's32[1]{0}', space=sflag, size = 0x4, scoped, tag = 'scoped memory for tpu_custom_call.1']
    #allocation5 [shape = 'u8[8192]{0}', space=vmem, size = 0x2000, scoped, tag = 'input window, operand 1, single buffered']
    #allocation6 [shape = 's32[1]{0}', space=sflag, size = 0x4, scoped, tag = 'scoped memory for tpu_custom_call.1']
    #allocation7 [shape = 'u8[4096]{0}', space=vmem, size = 0x1000, scoped, tag = 'output window, operand 0, single buffered']
    #allocation8 [shape = 'u8[4096]{0}', space=vmem, size = 0x1000, scoped, tag = 'output window, operand 1, single buffered']
    #allocation9 [shape = 's32[1]{0}', space=sflag, size = 0x4, scoped, tag = 'scoped memory for tpu_custom_call.1']
    %9 = vsyncpa [#allocation3], 0
    %10 = vsyncpa [#allocation6], 0
    %11 = vsyncpa [#allocation4], 0
    %12 = vsyncpa [#allocation9], 0
    // Predicated region
    $region2: #{tpu_custom_call.1} parent=1 // pred_check
      _
    $region3: #{tpu_custom_call.1} parent=1 // pred_check_branch
      %14 = sbr.rel (0) target = $region5
    $region4: #{tpu_custom_call.1} parent=1 // pred_region
      %16 = vsyncadd [#allocation3], 0
      %s18 = sshll.u32 %s0, 4
      %s19 = int_to_ptr.hbm [resolvable:$true] %s18
      %s20 = sshll.u32 [#allocation2], 4
      %s21 = int_to_ptr.vmem [resolvable:$true] %s20
      %23 = dma.hbm_to_vmem [thread:$0]  %s19, 32, %s21, [#allocation3]
    $region5: #{tpu_custom_call.1} parent=1 // pred_fallthru
      _
    // Predicated region
    $region6: #{tpu_custom_call.1} parent=1 // pred_check
      _
    $region7: #{tpu_custom_call.1} parent=1 // pred_check_branch
      %25 = sbr.rel (0) target = $region9
    $region8: #{tpu_custom_call.1} parent=1 // pred_region
      %s26 = sadd.s32 0, 0
      %p27 = scmp.lt.s32.totalorder %s26, 0
      %s28 = scalar_select %p27, %s26, 0
      %30 = vsyncadd [#allocation6], 0
      %s31 = smul.addr %s28, 2
      %s32 = smul.addr %s31, 8
      %s33 = scalar_lea.hbm %s1, %s32
      %s35 = sshll.u32 %s33, 4
      %s36 = int_to_ptr.hbm [resolvable:$true] %s35
      %s37 = sshll.u32 [#allocation5], 4
      %s38 = int_to_ptr.vmem [resolvable:$true] %s37
      %40 = dma.hbm_to_vmem [thread:$0]  %s36, 256, %s38, [#allocation6]
    $region9: #{tpu_custom_call.1} parent=1 // pred_fallthru
      _
    // Predicated region
    $region10: #{tpu_custom_call.1} parent=1 // pred_check
      _
    $region11: #{tpu_custom_call.1} parent=1 // pred_check_branch
      %42 = sbr.rel (0) target = $region13
    $region12: #{tpu_custom_call.1} parent=1 // pred_region
      %44 = dma.done [#allocation3], 32
    $region13: #{tpu_custom_call.1} parent=1 // pred_fallthru
      _
    // Predicated region
    $region14: #{tpu_custom_call.1} parent=1 // pred_check
      _
    $region15: #{tpu_custom_call.1} parent=1 // pred_check_branch
      %46 = sbr.rel (0) target = $region17
    $region16: #{tpu_custom_call.1} parent=1 // pred_region
      %48 = dma.done [#allocation6], 256
    $region17: #{tpu_custom_call.1} parent=1 // pred_fallthru
      _
    %s49 = sadd.s32 0, 0
    %p50 = scmp.lt.s32.totalorder %s49, 0
    %s51 = scalar_select %p50, %s49, 0
    %p52 = scmp.eq.s32.totalorder 0, 0
    // Predicated region
    $region18: #{tpu_custom_call.1} parent=1 // pred_check
      %p53 = pneg %p52
    $region19: #{tpu_custom_call.1} parent=1 // pred_check_branch
      %55 = sbr.rel (%p53) target = $region21
    $region20: #{tpu_custom_call.1} parent=1 // pred_region
      %56 = vst [vmem:[#allocation7] sm:$0xff] 0.0
      %57 = vst [vmem:[#allocation8] sm:$0xff] 0.0
    $region21: #{tpu_custom_call.1} parent=1 // pred_fallthru
      _
    %v58 = vld [vmem:[#allocation5] sm:$0xff]
    %v59 = vld [vmem:[#allocation5 + $0x8] sm:$0xff]
    %62 = vrot.lane.b32.xlu0 %v58, 16
    %v63 = vpop.permute.xlu0 %62
    %64 = vrot.lane.b32.xlu0 %v59, 16
    %v65 = vpop.permute.xlu0 %64
    %vm66 = vcmask 130048
    %v67 = vsel %vm66, %v63, %v65
    %v70 = vsub.f32 %v58, %v63
    %v71 = vsub.f32 %v59, %v67
    %v72 = vmul.f32 %v70, %v70
    %v73 = vmul.f32 %v71, %v71
    %vm74 = vcmask 1047680
    %v75 = vsel %vm74, %v72, 0.0
    %v76 = vrot.slane %v75, 4
    %v77 = vadd.f32 %v75, %v76
    %v78 = vrot.slane %v77, 2
    %v79 = vadd.f32 %v77, %v78
    %v80 = vrot.slane %v79, 1
    %v81 = vadd.f32 %v79, %v80
    %v82 = vrot.slane %v73, 4
    %v83 = vadd.f32 %v73, %v82
    %v84 = vrot.slane %v83, 2
    %v85 = vadd.f32 %v83, %v84
    %v86 = vrot.slane %v85, 1
    %v87 = vadd.f32 %v85, %v86
    %90 = vrot.lane.b32.xlu0 %v81, 112
    %v91 = vpop.permute.xlu0 %90
    %92 = vrot.lane.b32.xlu0 %v87, 112
    %v93 = vpop.permute.xlu0 %92
    %vm94 = vcmask 916480
    %v95 = vsel %vm94, %v91, %v93
    %v98 = vsel %vm94, %v93, 0.0
    %v99 = vadd.f32 %v95, %v98
    %100 = vadd.xlane.f32.xlu0 %v99
    %v101 = vpop.xlane.xlu0 %100
    %v102 = vld [vmem:[#allocation7] sm:$0xff]
    %v103 = vadd.f32 %v102, %v101
    %104 = vst [vmem:[#allocation7] sm:$0xff] %v103
    %105 = vrot.lane.b32.xlu0 %v58, 1
    %v106 = vpop.permute.xlu0 %105
    %107 = vrot.lane.b32.xlu0 %v59, 1
    %v108 = vpop.permute.xlu0 %107
    %vm109 = vcmask 7168
    %v110 = vsel %vm109, %v106, %v108
    %v113 = vsub.f32 %v58, %v106
    %v114 = vsub.f32 %v59, %v110
    %v115 = vmul.f32 %v113, %v113
    %v116 = vmul.f32 %v114, %v114
    %vm117 = vcmask 1047560
    %v118 = vsel %vm117, %v115, 0.0
    %v119 = vrot.slane %v118, 4
    %v120 = vadd.f32 %v118, %v119
    %v121 = vrot.slane %v120, 2
    %v122 = vadd.f32 %v120, %v121
    %v123 = vrot.slane %v122, 1
    %v124 = vadd.f32 %v122, %v123
    %v125 = vrot.slane %v116, 4
    %v126 = vadd.f32 %v116, %v125
    %v127 = vrot.slane %v126, 2
    %v128 = vadd.f32 %v126, %v127
    %v129 = vrot.slane %v128, 1
    %v130 = vadd.f32 %v128, %v129
    %v131 = vld [vmem:[#allocation2] sm:$0x3]
    %v133 = vperm.slane %v131, 0
    %v134 = vperm.slane %v131, 1
    %135 = vrot.lane.b32.xlu0 %v133, 1
    %v136 = vpop.permute.xlu0 %135
    %137 = vrot.lane.b32.xlu0 %v134, 1
    %v138 = vpop.permute.xlu0 %137
    %v139 = vsel %vm109, %v136, %v138
    %v142 = vmul.f32 %v124, %v136
    %v143 = vmul.f32 %v130, %v139
    %146 = vrot.lane.b32.xlu0 %v142, 127
    %v147 = vpop.permute.xlu0 %146
    %148 = vrot.lane.b32.xlu0 %v143, 127
    %v149 = vpop.permute.xlu0 %148
    %vm150 = vcmask 1039360
    %v151 = vsel %vm150, %v147, %v149
    %vm154 = vcmask 1040384
    %v155 = vsel %vm154, %v151, 0.0
    %vm156 = vcmask 1032192
    %v157 = vsel %vm156, %v149, 0.0
    %v158 = vadd.f32 %v155, %v157
    %159 = vadd.xlane.f32.xlu0 %v158
    %v160 = vpop.xlane.xlu0 %159
    %v161 = vld [vmem:[#allocation8] sm:$0xff]
    %v162 = vperm.slane %v160, 0
    %v163 = vadd.f32 %v161, %v162
    %164 = vst [vmem:[#allocation8] sm:$0xff] %v163
    // Predicated region
    $region22: #{tpu_custom_call.1} parent=1 // pred_check
      _
    $region23: #{tpu_custom_call.1} parent=1 // pred_check_branch
      %166 = sbr.rel (0) target = $region25
    $region24: #{tpu_custom_call.1} parent=1 // pred_region
      %168 = vsyncadd [#allocation4], 0
      %s170 = sshll.u32 [#allocation7], 4
      %s171 = int_to_ptr.vmem [resolvable:$true] %s170
      %s172 = sshll.u32 %s2, 4
      %s173 = int_to_ptr.hbm [resolvable:$true] %s172
      %175 = dma.vmem_to_hbm [thread:$0]  %s171, 128, %s173, [#allocation4]
    $region25: #{tpu_custom_call.1} parent=1 // pred_fallthru
      _
    // Predicated region
    $region26: #{tpu_custom_call.1} parent=1 // pred_check
      _
    $region27: #{tpu_custom_call.1} parent=1 // pred_check_branch
      %177 = sbr.rel (0) target = $region29
    $region28: #{tpu_custom_call.1} parent=1 // pred_region
      %179 = vsyncadd [#allocation9], 0
      %s181 = sshll.u32 [#allocation8], 4
      %s182 = int_to_ptr.vmem [resolvable:$true] %s181
      %s183 = sshll.u32 %s3, 4
      %s184 = int_to_ptr.hbm [resolvable:$true] %s183
      %186 = dma.vmem_to_hbm [thread:$0]  %s182, 128, %s184, [#allocation9]
    $region29: #{tpu_custom_call.1} parent=1 // pred_fallthru
      _
    // Predicated region
    $region30: #{tpu_custom_call.1} parent=1 // pred_check
      _
    $region31: #{tpu_custom_call.1} parent=1 // pred_check_branch
      %188 = sbr.rel (0) target = $region33
    $region32: #{tpu_custom_call.1} parent=1 // pred_region
      %190 = dma.done [#allocation4], 128
    $region33: #{tpu_custom_call.1} parent=1 // pred_fallthru
      _
    // Predicated region
    $region34: #{tpu_custom_call.1} parent=1 // pred_check
      _
    $region35: #{tpu_custom_call.1} parent=1 // pred_check_branch
      %192 = sbr.rel (0) target = $region37
    $region36: #{tpu_custom_call.1} parent=1 // pred_region
      %194 = dma.done [#allocation9], 128
    $region37: #{tpu_custom_call.1} parent=1 // pred_fallthru
      _
    %195 = vsyncpa [#allocation3], 1
    %196 = vsyncpa [#allocation6], 1
    %197 = vsyncpa [#allocation4], 1
    %198 = vsyncpa [#allocation9], 1

</llo_original>
